<compile_context>
chip_gen: v5e
topology: v5e:2x2
jax: 0.10.0
libtpu: 0.0.40
codegen_flags: <defaults>
</compile_context>

<pallas_src>
import math

import jax
import jax.numpy as jnp
from jax import lax
from jax.experimental import pallas as pl
from jax.experimental.pallas import tpu as pltpu


def _round_up(x, m):
    return (x + m - 1) // m * m


def _tpu_generation():
    """Best-effort TPU generation detection (5 = v5e/v5p, 6 = v6e, 7 = v7x)."""
    try:
        kind = jax.devices()[0].device_kind.lower()
    except Exception:
        return 6
    if "v5" in kind or "5 lite" in kind:
        return 5
    if "v6" in kind or "6 lite" in kind:
        return 6
    if "v7" in kind or "tpu7" in kind or "7x" in kind:
        return 7
    return 6


# ---------------------------------------------------------------------------
# Path A: small vocab — exact one-hot MXU matmul over vocab chunks.
# ---------------------------------------------------------------------------
def _split_table_planes(table, vocab_chunk):
    """Split `table` into bf16 planes whose sum reconstructs it exactly.

    Returns (planes2d, num_planes): planes2d has shape (V_pad*P, E) with the
    plane index interleaved fastest along rows (row = v*P + p), zero-padded so
    that V_pad is a multiple of `vocab_chunk`.
    """
    v, e = table.shape
    if table.dtype == jnp.bfloat16:
        plane_list = [table]
    else:
        t32 = table.astype(jnp.float32)
        p0 = t32.astype(jnp.bfloat16)
        r1 = t32 - p0.astype(jnp.float32)          # exact residual
        p1 = r1.astype(jnp.bfloat16)
        r2 = r1 - p1.astype(jnp.float32)           # exact residual
        p2 = r2.astype(jnp.bfloat16)               # exact (<= 8 bits left)
        plane_list = [p0, p1, p2]                  # p0 + p1 + p2 == t32 exactly
    num_planes = len(plane_list)
    stacked = jnp.stack(plane_list, axis=1)        # (V, P, E)
    v_pad = _round_up(v, vocab_chunk)
    if v_pad != v:
        stacked = jnp.pad(stacked, ((0, v_pad - v), (0, 0), (0, 0)))
    return stacked.reshape(v_pad * num_planes, e), num_planes


def _embed_onehot(flat_ids, table, *, block_tokens, out_dtype):
    n_pad = flat_ids.shape[0]
    v, e = table.shape

    # Vocab chunk: <=512 ids per chunk, multiple of 8, minimal padding.
    n_chunks = -(-v // 512)
    vocab_chunk = _round_up(-(-v // n_chunks), 8)
    planes2d, num_planes = _split_table_planes(table, vocab_chunk)
    chunk_rows = vocab_chunk * num_planes
    n_chunks = planes2d.shape[0] // chunk_rows

    ids_2d = flat_ids.reshape(n_pad, 1)

    def kernel(ids_ref, tchunk_ref, out_ref, acc_ref):
        k = pl.program_id(1)

        @pl.when(k == 0)
        def _():
            acc_ref[...] = jnp.zeros_like(acc_ref)

        ids = ids_ref[...]                                       # (T, 1) int32
        # One-hot over this chunk's interleaved (vocab_chunk * P) rows: rows
        # [(id - k*chunk)*P, ... + P) are 1, everything else 0 (no int div).
        lo = (ids - k * vocab_chunk) * num_planes                # (T, 1)
        li = lax.broadcasted_iota(jnp.int32, (block_tokens, chunk_rows), 1)
        onehot = jnp.logical_and(li >= lo, li < lo + num_planes)
        onehot = onehot.astype(jnp.bfloat16)                     # exact 0/1
        acc_ref[...] += jnp.dot(onehot, tchunk_ref[...],
                                preferred_element_type=jnp.float32)

        @pl.when(k == pl.num_programs(1) - 1)
        def _():
            out_ref[...] = acc_ref[...].astype(out_ref.dtype)

    return pl.pallas_call(
        kernel,
        out_shape=jax.ShapeDtypeStruct((n_pad, e), out_dtype),
        grid_spec=pltpu.PrefetchScalarGridSpec(
            num_scalar_prefetch=0,
            grid=(n_pad // block_tokens, n_chunks),
            in_specs=[
                pl.BlockSpec((block_tokens, 1), lambda i, k: (i, 0)),
                pl.BlockSpec((chunk_rows, e), lambda i, k: (k, 0)),
            ],
            out_specs=pl.BlockSpec((block_tokens, e), lambda i, k: (i, 0)),
            scratch_shapes=[pltpu.VMEM((block_tokens, e), jnp.float32)],
        ),
        compiler_params=pltpu.CompilerParams(
            dimension_semantics=("parallel", "arbitrary"),
            vmem_limit_bytes=32 * 1024 * 1024,
        ),
    )(ids_2d, planes2d)


# ---------------------------------------------------------------------------
# Path B: large vocab — manual per-row gather DMAs from HBM.
# ---------------------------------------------------------------------------
def _make_dma_gather_kernel(block_tokens, issue_unroll):
    def kernel(ids_ref, table_hbm, out_ref, copy_sem):
        base = pl.program_id(0) * block_tokens

        def issue(j, carry):
            rid = ids_ref[base + j]
            pltpu.make_async_copy(
                table_hbm.at[pl.ds(rid, 1), :],
                out_ref.at[pl.ds(j, 1), :],
                copy_sem,
            ).start()
            return carry

        # Unrolled issue loop: no compute here, wall time is bound by the
        # scalar slot issuing descriptors -> expose issue-level parallelism.
        lax.fori_loop(0, block_tokens, issue, 0, unroll=issue_unroll)

        # Single aggregate wait: all `block_tokens` row copies signal the same
        # semaphore; one wait whose descriptor covers (block_tokens, E) bytes
        # (the exact sum of the issued copies) drains them all before the
        # kernel body ends, so the out tile is complete before writeback.
        pltpu.make_async_copy(
            table_hbm.at[pl.ds(0, block_tokens), :],
            out_ref,
            copy_sem,
        ).wait()

    return kernel


def _embed_dma_gather_one_call(flat_ids, table, *, block_tokens, issue_unroll=8):
    n_pad = flat_ids.shape[0]
    v, e = table.shape
    return pl.pallas_call(
        _make_dma_gather_kernel(block_tokens, issue_unroll),
        out_shape=jax.ShapeDtypeStruct((n_pad, e), table.dtype),
        grid_spec=pltpu.PrefetchScalarGridSpec(
            num_scalar_prefetch=1,                          # ids -> SMEM
            grid=(n_pad // block_tokens,),
            in_specs=[pl.BlockSpec(memory_space=pl.ANY)],   # table stays in HBM
            out_specs=pl.BlockSpec((block_tokens, e), lambda i, ids: (i, 0)),
            scratch_shapes=[pltpu.SemaphoreType.DMA(())],
        ),
        compiler_params=pltpu.CompilerParams(
            dimension_semantics=("parallel",)),
    )(flat_ids, table)


def _embed_dma_gather(flat_ids, table, *, block_tokens, max_tokens_per_call=32768):
    n_pad = flat_ids.shape[0]
    # Keep the scalar-prefetched id array small (1D SMEM arrays pad to the
    # next power of two of 4*N bytes): chunk very long token streams.
    max_call = max(block_tokens,
                   (max_tokens_per_call // block_tokens) * block_tokens)
    if n_pad <= max_call:
        return _embed_dma_gather_one_call(flat_ids, table,
                                          block_tokens=block_tokens)
    outs = []
    for s in range(0, n_pad, max_call):
        outs.append(_embed_dma_gather_one_call(
            flat_ids[s:s + max_call], table, block_tokens=block_tokens))
    return jnp.concatenate(outs, axis=0)


# ---------------------------------------------------------------------------
# Public forward: equivalent of EmbeddingLayer.forward(batch_data).
# ---------------------------------------------------------------------------
def embedding_layer_forward(batch_data, embedding_table, *,
                            block_tokens=None,
                            onehot_vocab_limit=None,
                            max_tokens_per_gather_call=32768):
    """embedding_table[batch_data] — (...,) int -> (..., E)."""
    assert embedding_table.ndim == 2, "embedding table must be (V, E)"
    lead_shape = batch_data.shape
    n = int(math.prod(lead_shape)) if lead_shape else 1
    v, e = embedding_table.shape

    gen = _tpu_generation()
    if onehot_vocab_limit is None:
        # One-hot cost scales with V*E FLOPs, gather with E bytes -> V-based
        # crossover, per generation (higher where MXU/HBM ratio is higher).
        onehot_vocab_limit = {5: 2048, 6: 4096, 7: 8192}.get(gen, 4096)

    use_onehot = v <= onehot_vocab_limit
    if block_tokens is None:
        block_tokens = (128 if gen == 5 else 256) if use_onehot else 256
    # Small inputs: shrink the token block (still a multiple of 8 sublanes).
    t_block = min(block_tokens, _round_up(max(n, 1), 8))
    if not use_onehot and v < t_block:
        use_onehot = True   # vocab smaller than a token block -> MXU path

    # Clamp ids so an out-of-range token can never address outside the table.
    ids = jnp.clip(batch_data.reshape(n).astype(jnp.int32), 0, v - 1)
    n_pad = _round_up(max(n, 1), t_block)
    if n_pad != n:
        ids = jnp.pad(ids, (0, n_pad - n))    # padded ids -> row 0, sliced off

    if use_onehot:
        out = _embed_onehot(ids, embedding_table,
                            block_tokens=t_block,
                            out_dtype=embedding_table.dtype)
    else:
        out = _embed_dma_gather(ids, embedding_table,
                                block_tokens=t_block,
                                max_tokens_per_call=max_tokens_per_gather_call)

    return out[:n].reshape(lead_shape + (e,))


if __name__ == "__main__":
    key = jax.random.PRNGKey(0)
    k_emb, k_ids, k_emb2, k_ids2 = jax.random.split(key, 4)

    # --- Small-vocab config (one-hot MXU path), matching the module demo ----
    vocab_size, embedding_size = 64, 128
    B, S = 2, 8
    pretrained_word_embeddings = jax.random.normal(
        k_emb, (vocab_size, embedding_size), dtype=jnp.float32)
    batch_data = jax.random.randint(
        k_ids, (B, S), minval=0, maxval=vocab_size, dtype=jnp.int32)

    embeds = jax.block_until_ready(
        embedding_layer_forward(batch_data, pretrained_word_embeddings))
    ref = pretrained_word_embeddings[batch_data]
    assert embeds.shape == (B, S, embedding_size)
    assert embeds.dtype == jnp.float32
    assert jnp.allclose(embeds, ref, rtol=1e-6, atol=1e-6), \
        "one-hot path mismatch vs reference gather"

    # --- Larger-vocab config exercising the manual DMA-gather path ----------
    vocab2, emb2 = 4096, 256
    table2 = jax.random.normal(k_emb2, (vocab2, emb2), dtype=jnp.float32)
    batch_data2 = jax.random.randint(
        k_ids2, (B, S), minval=0, maxval=vocab2, dtype=jnp.int32)
    embeds2 = jax.block_until_ready(
        embedding_layer_forward(batch_data2, table2, onehot_vocab_limit=0))
    assert jnp.allclose(embeds2, table2[batch_data2], rtol=1e-6, atol=1e-6), \
        "dma-gather path mismatch vs reference gather"

    print("KERNEL_OK")
</pallas_src>

<mosaic_0001>
module attributes {stable_mosaic.version = 11 : i64} {
  func.func @kernel(%arg0: i32, %arg1: i32, %arg2: memref<16x1xi32, #tpu.memory_space<vmem>>, %arg3: memref<192x128xbf16, #tpu.memory_space<vmem>>, %arg4: memref<16x128xf32, #tpu.memory_space<vmem>>, %arg5: memref<16x128xf32, #tpu.memory_space<vmem>>) attributes {dimension_semantics = [#tpu.dimension_semantics<parallel>, #tpu.dimension_semantics<arbitrary>], iteration_bounds = array<i64: 1, 1>, scalar_prefetch = 0 : i64, scratch_operands = 1 : i64, tpu.core_type = #tpu.core_type<tc>, window_params = [{transform_indices = @transform_0, window_bounds = array<i64: 16, 1>}, {transform_indices = @transform_1, window_bounds = array<i64: 192, 128>}, {transform_indices = @transform_2, window_bounds = array<i64: 16, 128>}]} {
    %c0_i32 = arith.constant 0 : i32
    %0 = arith.cmpi eq, %arg1, %c0_i32 : i32
    %1 = arith.extui %0 : i1 to i32
    %c0_i32_0 = arith.constant 0 : i32
    %2 = arith.cmpi ne, %1, %c0_i32_0 : i32
    scf.if %2 {
      %cst_11 = arith.constant 0.000000e+00 : f32
      %28 = vector.broadcast %cst_11 : f32 to vector<16x128xf32>
      %c0_12 = arith.constant 0 : index
      %c0_13 = arith.constant 0 : index
      %29 = vector.load %arg5[%c0_12, %c0_13] : memref<16x128xf32, #tpu.memory_space<vmem>>, vector<16x128xf32>
      tpu.vector_store %arg5[%c0_12, %c0_13], %28 {strides = array<i32>} : memref<16x128xf32, #tpu.memory_space<vmem>>, vector<16x128xf32>,
    } else {
    }
    %c0 = arith.constant 0 : index
    %c0_1 = arith.constant 0 : index
    %3 = vector.load %arg2[%c0, %c0_1] : memref<16x1xi32, #tpu.memory_space<vmem>>, vector<16x1xi32>
    %c64_i32 = arith.constant 64 : i32
    %4 = arith.muli %arg1, %c64_i32 : i32
    %5 = vector.broadcast %4 : i32 to vector<16x1xi32>
    %6 = arith.subi %3, %5 : vector<16x1xi32>
    %c3_i32 = arith.constant 3 : i32
    %7 = vector.broadcast %c3_i32 : i32 to vector<16x1xi32>
    %8 = arith.muli %6, %7 : vector<16x1xi32>
    %9 = tpu.iota {dimensions = array<i32: 1>} : vector<16x192xi32>
    %10 = vector.broadcast %8 : vector<16x1xi32> to vector<16x192xi32>
    %11 = arith.cmpi sge, %9, %10 : vector<16x192xi32>
    %c3_i32_2 = arith.constant 3 : i32
    %12 = vector.broadcast %c3_i32_2 : i32 to vector<16x1xi32>
    %13 = arith.addi %8, %12 : vector<16x1xi32>
    %14 = vector.broadcast %13 : vector<16x1xi32> to vector<16x192xi32>
    %15 = arith.cmpi slt, %9, %14 : vector<16x192xi32>
    %16 = arith.andi %11, %15 : vector<16x192xi1>
    %17 = arith.extui %16 : vector<16x192xi1> to vector<16x192xi32>
    %18 = arith.sitofp %17 : vector<16x192xi32> to vector<16x192xf32>
    %19 = arith.truncf %18 : vector<16x192xf32> to vector<16x192xbf16>
    %c0_3 = arith.constant 0 : index
    %c0_4 = arith.constant 0 : index
    %20 = vector.load %arg5[%c0_3, %c0_4] : memref<16x128xf32, #tpu.memory_space<vmem>>, vector<16x128xf32>
    %c0_5 = arith.constant 0 : index
    %c0_6 = arith.constant 0 : index
    %21 = vector.load %arg3[%c0_5, %c0_6] : memref<192x128xbf16, #tpu.memory_space<vmem>>, vector<192x128xbf16>
    %cst = arith.constant dense<0.000000e+00> : vector<16x128xf32>
    %22 = tpu.matmul %19, %21, %cst {dimension_numbers = #tpu.dot_dimension_numbers<[1], [0], [0], [1], [0, 0, 1, 1], [], []>} : vector<16x192xbf16>, vector<192x128xbf16>, vector<16x128xf32> -> vector<16x128xf32>
    %23 = arith.addf %20, %22 : vector<16x128xf32>
    %c0_7 = arith.constant 0 : index
    %c0_8 = arith.constant 0 : index
    %24 = vector.load %arg5[%c0_7, %c0_8] : memref<16x128xf32, #tpu.memory_space<vmem>>, vector<16x128xf32>
    tpu.vector_store %arg5[%c0_7, %c0_8], %23 {strides = array<i32>} : memref<16x128xf32, #tpu.memory_space<vmem>>, vector<16x128xf32>,
    %c0_i32_9 = arith.constant 0 : i32
    %25 = arith.cmpi eq, %arg1, %c0_i32_9 : i32
    %26 = arith.extui %25 : i1 to i32
    %c0_i32_10 = arith.constant 0 : i32
    %27 = arith.cmpi ne, %26, %c0_i32_10 : i32
    scf.if %27 {
      %c0_11 = arith.constant 0 : index
      %c0_12 = arith.constant 0 : index
      %28 = vector.load %arg5[%c0_11, %c0_12] : memref<16x128xf32, #tpu.memory_space<vmem>>, vector<16x128xf32>
      %c0_13 = arith.constant 0 : index
      %c0_14 = arith.constant 0 : index
      %29 = vector.load %arg4[%c0_13, %c0_14] : memref<16x128xf32, #tpu.memory_space<vmem>>, vector<16x128xf32>
      tpu.vector_store %arg4[%c0_13, %c0_14], %28 {strides = array<i32>} : memref<16x128xf32, #tpu.memory_space<vmem>>, vector<16x128xf32>,
    } else {
    }
    return
  }
  func.func @transform_0(%arg0: i32, %arg1: i32) -> (i32, i32) {
    %c0_i32 = arith.constant 0 : i32
    %c0_i32_0 = arith.constant 0 : i32
    return %arg0, %c0_i32 : i32, i32
  }
  func.func @transform_1(%arg0: i32, %arg1: i32) -> (i32, i32) {
    %c0_i32 = arith.constant 0 : i32
    %c0_i32_0 = arith.constant 0 : i32
    return %arg1, %c0_i32 : i32, i32
  }
  func.func @transform_2(%arg0: i32, %arg1: i32) -> (i32, i32) {
    %c0_i32 = arith.constant 0 : i32
    %c0_i32_0 = arith.constant 0 : i32
    return %arg0, %c0_i32 : i32, i32
  }
}

</mosaic_0001>

<llo_original>
// kernel: tpu_custom_call.1
$region0: #{tpu_custom_call.1}
  #allocation0 [shape = 'u32[]', space=smem, size = 0x4, offset = 0x4, fixed_abs, tag = 'smem constant byte address 0x4 - core index']
  #allocation1 [shape = 'u32[72,128]{1,0:T(1,128)}', space=vmem, size = 0x9000, scoped, tag = 'internal scratch']
  #allocation2 [shape = 'f32[16,128]{1,0:T(8,128)}', space=vmem, size = 0x2000, scoped, tag = 'scratch operand']
  %s0 = inlined_call_operand.vmem [shape: s32[16,1], index: 0, kind: input, shape index: {}]
  %s1 = inlined_call_operand.hbm [shape: bf16[192,128], index: 1, kind: input, shape index: {}]
  %s2 = inlined_call_operand.hbm [shape: f32[16,128], index: 2, kind: output, shape index: {}]
  %s3 = sld [smem:[#allocation0]]
  $region30: #{tpu_custom_call.1} parent=0
    _
  %s5 = ssub.s32 1, %s3
  %s6 = scalar_select 0, %s5, %s3
  $region1: #{tpu_custom_call.1} parent=0
    #allocation3 [shape = 'u8[49152]{0}', space=vmem, size = 0xc000, scoped, tag = 'input window, operand 1, single buffered']
    #allocation4 [shape = 's32[1]{0}', space=sflag, size = 0x4, scoped, tag = 'scoped memory for tpu_custom_call.1']
    #allocation5 [shape = 's32[1]{0}', space=sflag, size = 0x4, scoped, tag = 'scoped memory for tpu_custom_call.1']
    #allocation6 [shape = 'u8[8192]{0}', space=vmem, size = 0x2000, scoped, tag = 'output window, operand 0, single buffered']
    %7 = vsyncpa [#allocation4], 0
    %8 = vsyncpa [#allocation5], 0
    // Predicated region
    $region2: #{tpu_custom_call.1} parent=1 // pred_check
      _
    $region3: #{tpu_custom_call.1} parent=1 // pred_check_branch
      %10 = sbr.rel (0) target = $region5
    $region4: #{tpu_custom_call.1} parent=1 // pred_region
      _
    $region5: #{tpu_custom_call.1} parent=1 // pred_fallthru
      _
    // Predicated region
    $region6: #{tpu_custom_call.1} parent=1 // pred_check
      _
    $region7: #{tpu_custom_call.1} parent=1 // pred_check_branch
      %12 = sbr.rel (0) target = $region9
    $region8: #{tpu_custom_call.1} parent=1 // pred_region
      %14 = vsyncadd [#allocation4], 0
      %s15 = sshll.u32 %s1, 4
      %s16 = int_to_ptr.hbm [resolvable:$true] %s15
      %s17 = sshll.u32 [#allocation3], 4
      %s18 = int_to_ptr.vmem [resolvable:$true] %s17
      %23 = dma.hbm_to_vmem [thread:$0]  %s16, 1536, %s18, [#allocation4], 64, 64, 4
    $region9: #{tpu_custom_call.1} parent=1 // pred_fallthru
      _
    // Predicated region
    $region10: #{tpu_custom_call.1} parent=1 // pred_check
      _
    $region11: #{tpu_custom_call.1} parent=1 // pred_check_branch
      %25 = sbr.rel (0) target = $region13
    $region12: #{tpu_custom_call.1} parent=1 // pred_region
      %27 = dma.done [#allocation4], 1536
    $region13: #{tpu_custom_call.1} parent=1 // pred_fallthru
      _
    %p29 = scmp.eq.s32.totalorder 0, 0
    // Predicated region
    $region14: #{tpu_custom_call.1} parent=1 // pred_check
      %p30 = pneg %p29
    $region15: #{tpu_custom_call.1} parent=1 // pred_check_branch
      %32 = sbr.rel (%p30) target = $region17
    $region16: #{tpu_custom_call.1} parent=1 // pred_region
      %33 = vst [vmem:[#allocation2] sm:$0xff] 0.0
      %34 = vst [vmem:[#allocation2 + $0x8] sm:$0xff] 0.0
    $region17: #{tpu_custom_call.1} parent=1 // pred_fallthru
      _
    %v35 = vld [vmem:[%s0] sm:$0xff]
    %v36 = vld [vmem:[%s0 + $0x8] sm:$0xff]
    %s37 = smul.u32 0, 64
    %v38 = vstv %s37
    %v39 = vsub.s32 %v35, %v38
    %v40 = vsub.s32 %v36, %v38
    %v41 = vmul.u32 %v39, 3
    %v42 = vmul.u32 %v40, 3
    %v43 = vlaneseq
    %v44 = vand.u32 %v43, 127
    %v45 = vadd.s32 %v44, 128
    %46 = vset.pattern.permute.xlu0 0
    %47 = vperm.xlu0 %46, %v41
    %v48 = vpop.permute.xlu0 %47
    %49 = vset.pattern.permute.xlu0 0
    %50 = vperm.xlu0 %49, %v42
    %v51 = vpop.permute.xlu0 %50
    %vm52 = vcmp.ge.s32.totalorder %v44, %v48
    %vm53 = vcmp.ge.s32.totalorder %v45, %v48
    %vm54 = vcmp.ge.s32.totalorder %v44, %v51
    %vm55 = vcmp.ge.s32.totalorder %v45, %v51
    %v56 = vadd.s32 %v41, 3
    %v57 = vadd.s32 %v42, 3
    %58 = vset.pattern.permute.xlu0 0
    %59 = vperm.xlu0 %58, %v56
    %v60 = vpop.permute.xlu0 %59
    %61 = vset.pattern.permute.xlu0 0
    %62 = vperm.xlu0 %61, %v57
    %v63 = vpop.permute.xlu0 %62
    %vm64 = vcmp.lt.s32.totalorder %v44, %v60
    %vm65 = vcmp.lt.s32.totalorder %v45, %v60
    %vm66 = vcmp.lt.s32.totalorder %v44, %v63
    %vm67 = vcmp.lt.s32.totalorder %v45, %v63
    %vm68 = vmand %vm52, %vm64
    %vm69 = vmand %vm53, %vm65
    %vm70 = vmand %vm54, %vm66
    %vm71 = vmand %vm55, %vm67
    %v72 = vsel %vm68, 1, 0
    %v73 = vsel %vm69, 1, 0
    %v74 = vsel %vm70, 1, 0
    %v75 = vsel %vm71, 1, 0
    %v76 = vcvt.s32.f32 %v72
    %v77 = vcvt.s32.f32 %v73
    %v78 = vcvt.s32.f32 %v74
    %v79 = vcvt.s32.f32 %v75
    %v80 = vpack.c.bf16 %v78, %v76
    %v81 = vpack.c.bf16 %v79, %v77
    %v82 = vld [vmem:[#allocation2] sm:$0xff]
    %v83 = vld [vmem:[#allocation2 + $0x8] sm:$0xff]
    %v84 = vld [vmem:[#allocation3] sm:$0xf]
    %v85 = vld [vmem:[#allocation3 + $0x4] sm:$0xf]
    %v86 = vld [vmem:[#allocation3 + $0x8] sm:$0xf]
    %v87 = vld [vmem:[#allocation3 + $0xc] sm:$0xf]
    %v88 = vld [vmem:[#allocation3 + $0x10] sm:$0xf]
    %v89 = vld [vmem:[#allocation3 + $0x14] sm:$0xf]
    %v90 = vld [vmem:[#allocation3 + $0x18] sm:$0xf]
    %v91 = vld [vmem:[#allocation3 + $0x1c] sm:$0xf]
    %v92 = vld [vmem:[#allocation3 + $0x20] sm:$0xf]
    %v93 = vld [vmem:[#allocation3 + $0x24] sm:$0xf]
    %v94 = vld [vmem:[#allocation3 + $0x28] sm:$0xf]
    %v95 = vld [vmem:[#allocation3 + $0x2c] sm:$0xf]
    %v96 = vld [vmem:[#allocation3 + $0x30] sm:$0xf]
    %v97 = vld [vmem:[#allocation3 + $0x34] sm:$0xf]
    %v98 = vld [vmem:[#allocation3 + $0x38] sm:$0xf]
    %v99 = vld [vmem:[#allocation3 + $0x3c] sm:$0xf]
    %v100 = vld [vmem:[#allocation3 + $0x40] sm:$0xf]
    %v101 = vld [vmem:[#allocation3 + $0x44] sm:$0xf]
    %v102 = vld [vmem:[#allocation3 + $0x48] sm:$0xf]
    %v103 = vld [vmem:[#allocation3 + $0x4c] sm:$0xf]
    %v104 = vld [vmem:[#allocation3 + $0x50] sm:$0xf]
    %v105 = vld [vmem:[#allocation3 + $0x54] sm:$0xf]
    %v106 = vld [vmem:[#allocation3 + $0x58] sm:$0xf]
    %v107 = vld [vmem:[#allocation3 + $0x5c] sm:$0xf]
    %v132 = vunpack.c.l.b16 %v84
    %v133 = vunpack.c.l.b16 %v85
    %v134 = vunpack.c.l.b16 %v86
    %v135 = vunpack.c.l.b16 %v87
    %v136 = vunpack.c.l.b16 %v88
    %v137 = vunpack.c.l.b16 %v89
    %v138 = vunpack.c.l.b16 %v90
    %v139 = vunpack.c.l.b16 %v91
    %v140 = vunpack.c.l.b16 %v92
    %v141 = vunpack.c.l.b16 %v93
    %v142 = vunpack.c.l.b16 %v94
    %v143 = vunpack.c.l.b16 %v95
    %v144 = vunpack.c.l.b16 %v96
    %v145 = vunpack.c.l.b16 %v97
    %v146 = vunpack.c.l.b16 %v98
    %v147 = vunpack.c.l.b16 %v99
    %v148 = vunpack.c.l.b16 %v100
    %v149 = vunpack.c.l.b16 %v101
    %v150 = vunpack.c.l.b16 %v102
    %v151 = vunpack.c.l.b16 %v103
    %v152 = vunpack.c.l.b16 %v104
    %v153 = vunpack.c.l.b16 %v105
    %v154 = vunpack.c.l.b16 %v106
    %v155 = vunpack.c.l.b16 %v107
    %v156 = vpack.c.b16 %v133, %v132
    %v157 = vpack.c.b16 %v135, %v134
    %v158 = vpack.c.b16 %v137, %v136
    %v159 = vpack.c.b16 %v139, %v138
    %v160 = vpack.c.b16 %v141, %v140
    %v161 = vpack.c.b16 %v143, %v142
    %v162 = vpack.c.b16 %v145, %v144
    %v163 = vpack.c.b16 %v147, %v146
    %v164 = vpack.c.b16 %v149, %v148
    %v165 = vpack.c.b16 %v151, %v150
    %v166 = vpack.c.b16 %v153, %v152
    %v167 = vpack.c.b16 %v155, %v154
    %vm180 = vcmask 523264
    %v182 = vsel %vm180, %v81, 0
    %184 = vmatpush.bf16.msra.mxu0 %v163
    %185 = vmatpush.bf16.msra.mxu0 %v162
    %186 = vmatpush.bf16.msra.mxu0 %v161
    %187 = vmatpush.bf16.msra.mxu0 %v160
    %188 = vmatpush.bf16.msra.mxu0 %v159
    %189 = vmatpush.bf16.msra.mxu0 %v158
    %190 = vmatpush.bf16.msra.mxu0 %v157
    %191 = vmatpush.bf16.msra.mxu0 %v156
    %192 = vmatmul.bf16.gmra.mxu0 %v80
    %v193 = vpop.f32.mrf.mxu0
    %v194 = vadd.f32 0.0, %v193
    %v195 = vpop.f32.mrf.mxu0
    %v196 = vadd.f32 0.0, %v195
    %197 = vdwg.mxu0
    %198 = vmatpush.bf16.msra.mxu0 0
    %199 = vmatpush.bf16.msra.mxu0 0
    %200 = vmatpush.bf16.msra.mxu0 0
    %201 = vmatpush.bf16.msra.mxu0 0
    %202 = vmatpush.bf16.msra.mxu0 %v167
    %203 = vmatpush.bf16.msra.mxu0 %v166
    %204 = vmatpush.bf16.msra.mxu0 %v165
    %205 = vmatpush.bf16.msra.mxu0 %v164
    %206 = vmatmul.bf16.gmra.mxu0 %v182
    %v207 = vpop.f32.mrf.mxu0
    %v208 = vadd.f32 %v194, %v207
    %v209 = vpop.f32.mrf.mxu0
    %v210 = vadd.f32 %v196, %v209
    %211 = vdwg.mxu0
    %v212 = vadd.f32 %v82, %v208
    %v213 = vadd.f32 %v83, %v210
    %214 = vst [vmem:[#allocation2] sm:$0xff] %v212
    %215 = vst [vmem:[#allocation2 + $0x8] sm:$0xff] %v213
    // Predicated region
    $region18: #{tpu_custom_call.1} parent=1 // pred_check
      %p216 = pneg %p29
    $region19: #{tpu_custom_call.1} parent=1 // pred_check_branch
      %218 = sbr.rel (%p216) target = $region21
    $region20: #{tpu_custom_call.1} parent=1 // pred_region
      %v219 = vld [vmem:[#allocation2] sm:$0xff]
      %v220 = vld [vmem:[#allocation2 + $0x8] sm:$0xff]
      %221 = vst [vmem:[#allocation6] sm:$0xff] %v219
      %222 = vst [vmem:[#allocation6 + $0x8] sm:$0xff] %v220
    $region21: #{tpu_custom_call.1} parent=1 // pred_fallthru
      _
    // Predicated region
    $region22: #{tpu_custom_call.1} parent=1 // pred_check
      _
    $region23: #{tpu_custom_call.1} parent=1 // pred_check_branch
      %224 = sbr.rel (0) target = $region25
    $region24: #{tpu_custom_call.1} parent=1 // pred_region
      %226 = vsyncadd [#allocation5], 0
      %s227 = sshll.u32 [#allocation6], 4
      %s228 = int_to_ptr.vmem [resolvable:$true] %s227
      %s229 = sshll.u32 %s2, 4
      %s230 = int_to_ptr.hbm [resolvable:$true] %s229
      %235 = dma.vmem_to_hbm [thread:$0]  %s228, 256, %s230, [#allocation5], 128, 128, 8
    $region25: #{tpu_custom_call.1} parent=1 // pred_fallthru
      _
    // Predicated region
    $region26: #{tpu_custom_call.1} parent=1 // pred_check
      _
    $region27: #{tpu_custom_call.1} parent=1 // pred_check_branch
      %237 = sbr.rel (0) target = $region29
    $region28: #{tpu_custom_call.1} parent=1 // pred_region
      %239 = dma.done [#allocation5], 256
    $region29: #{tpu_custom_call.1} parent=1 // pred_fallthru
      _
    %240 = vsyncpa [#allocation4], 1
    %241 = vsyncpa [#allocation5], 1

</llo_original>
